<compile_context>
chip_gen: v7x
topology: tpu7x:2x2x1
jax: 0.10.0
libtpu: 0.0.40
codegen_flags: <defaults>
</compile_context>

<pallas_src>
import jax
import jax.numpy as jnp
from jax.experimental import pallas as pl
from jax.experimental.pallas import tpu as pltpu

BN_EPS = 1e-5


def _round_up(n, m):
    return ((n + m - 1) // m) * m


def _vae_cluster_kernel(x_ref, w1_ref, consts_ref, w_out_ref, out_ref):
    """consts_ref rows: 0 = gamma[hidden], 1 = beta[hidden], 2 = fused out bias[pad_out]."""
    hidden = w1_ref.shape[1]
    pad_out = out_ref.shape[1]

    # ---- Linear(block_dim + embed_dim, 256): single K=128 bf16 matmul, f32 acc.
    #      Bias b1 dropped (cancelled exactly by training-mode BatchNorm).
    h = jnp.dot(x_ref[...], w1_ref[...], preferred_element_type=jnp.float32)

    # ---- BatchNorm1d(256), training mode (batch mean, biased variance), f32.
    #      Two independent sublane reductions -> shorter serial chain.
    inv_b = jnp.float32(1.0 / h.shape[0])
    s1 = jnp.sum(h, axis=0, keepdims=True)
    s2 = jnp.sum(h * h, axis=0, keepdims=True)
    mean = s1 * inv_b
    var = s2 * inv_b - mean * mean
    gamma = consts_ref[0:1, :hidden]
    beta = consts_ref[1:2, :hidden]
    h = (h - mean) * jax.lax.rsqrt(var + BN_EPS) * gamma + beta

    # ---- ReLU (f32)
    h = jnp.maximum(h, 0.0)

    # ---- Fused heads: one lane-dense matmul -> [pad128(embed) | pad128(logits)]
    b_out = consts_ref[2:3, :pad_out]
    out = jnp.dot(h.astype(jnp.bfloat16), w_out_ref[...],
                  preferred_element_type=jnp.float32) + b_out
    out_ref[...] = out.astype(out_ref.dtype)


def prepare_params(params, block_dim):
    """One-time transformation of torch-layout params into the kernel layout.

    params: dict with w1 [d_in,256], b1 [1,256] (unused: cancelled by BN),
            gamma/beta [1,256], w2 [256,oed], b2 [1,oed], w3 [oed,k], b3 [1,k].
    """
    w1 = params["w1"]
    w2, b2 = params["w2"], params["b2"]
    w3, b3 = params["w3"], params["b3"]
    hidden = w1.shape[1]
    oed = w2.shape[1]
    k_bins = w3.shape[1]
    pad_e = _round_up(oed, 128)
    pad_l = _round_up(k_bins, 128)
    pad_out = pad_e + pad_l
    c_width = max(hidden, pad_out)

    # Pre-fuse logits head: logits = embed @ w3 + b3 = h @ (w2 @ w3) + (b2 @ w3 + b3)
    w23 = w2 @ w3                                   # [256, k_bins]
    b23 = b2 @ w3 + b3                              # [1, k_bins]

    def pad_cols(a, n):
        return jnp.pad(a, ((0, 0), (0, n - a.shape[1])))

    w_out = jnp.concatenate([pad_cols(w2, pad_e), pad_cols(w23, pad_l)],
                            axis=1).astype(jnp.bfloat16)      # [256, pad_out]
    b_out = jnp.concatenate([pad_cols(b2, pad_e), pad_cols(b23, pad_l)],
                            axis=1).astype(jnp.float32)       # [1, pad_out]

    # Pack all small per-lane constants into one (8, C) f32 tile (rows 0/1/2).
    consts = jnp.zeros((8, c_width), jnp.float32)
    consts = consts.at[0, :hidden].set(params["gamma"].reshape(-1))
    consts = consts.at[1, :hidden].set(params["beta"].reshape(-1))
    consts = consts.at[2, :pad_out].set(b_out.reshape(-1))

    return dict(
        w1=w1.astype(jnp.bfloat16),                 # [d_in, 256] bf16
        consts=consts,                              # [8, C] f32
        w_out=w_out,                                # [256, pad_out] bf16
        hidden=hidden, out_embed_dim=oed, k_bins=k_bins,
        pad_e=pad_e, pad_l=pad_l, pad_out=pad_out,
    )


def vae_cluster_forward(text_latent, d_embedding, prep):
    """Whole VAE_Cluster forward in one Pallas kernel invocation.

    Returns the lane-dense padded slab [B, pad_e + pad_l] f32:
      columns [0, pad_e)            -> padded embed  (first out_embed_dim cols valid)
      columns [pad_e, pad_e+pad_l)  -> padded logits (first k_bins cols valid)
    Use split_outputs() if a consumer needs the narrow (unpadded) views.
    """
    B = text_latent.shape[0]
    d_in = text_latent.shape[1] + d_embedding.shape[1]
    hidden = prep["hidden"]
    pad_out = prep["pad_out"]

    # Single tile-aligned concat + bf16 cast in the wrapper -> one K=d_in matmul.
    x = jnp.concatenate([text_latent, d_embedding], axis=1).astype(jnp.bfloat16)

    vmem = pl.BlockSpec(memory_space=pltpu.MemorySpace.VMEM)

    flops = 2 * B * d_in * hidden + 2 * B * hidden * pad_out + 10 * B * hidden
    bytes_accessed = (B * d_in * 2 + d_in * hidden * 2 + prep["consts"].size * 4
                      + hidden * pad_out * 2 + B * pad_out * 4)

    out = pl.pallas_call(
        _vae_cluster_kernel,
        out_shape=jax.ShapeDtypeStruct((B, pad_out), jnp.float32),
        in_specs=[vmem] * 4,
        out_specs=vmem,
        cost_estimate=pl.CostEstimate(flops=flops, transcendentals=hidden,
                                      bytes_accessed=bytes_accessed),
    )(x, prep["w1"], prep["consts"], prep["w_out"])
    return out


def split_outputs(out_slab, prep):
    """Slice (logits, embed) out of the padded slab, for consumers that need them."""
    embed = out_slab[:, :prep["out_embed_dim"]]
    logits = out_slab[:, prep["pad_e"]:prep["pad_e"] + prep["k_bins"]]
    return logits, embed


def init_params(key, block_dim, embed_dim=100, output_embed_dim=100, k_bins=5):
    """Deterministic synthetic parameter init (shapes/init match the torch module)."""
    d_in = block_dim + embed_dim
    keys = jax.random.split(key, 6)

    def lin(kw, kb, fan_in, fan_out):
        bound = 1.0 / jnp.sqrt(jnp.float32(fan_in))
        w = jax.random.uniform(kw, (fan_in, fan_out), jnp.float32, -bound, bound)
        b = jax.random.uniform(kb, (1, fan_out), jnp.float32, -bound, bound)
        return w, b

    w1, b1 = lin(keys[0], keys[1], d_in, 256)
    w2, b2 = lin(keys[2], keys[3], 256, output_embed_dim)
    w3, b3 = lin(keys[4], keys[5], output_embed_dim, k_bins)
    gamma = jnp.ones((1, 256), jnp.float32)
    beta = jnp.zeros((1, 256), jnp.float32)
    return dict(w1=w1, b1=b1, gamma=gamma, beta=beta,
                w2=w2, b2=b2, w3=w3, b3=b3)


def _reference_forward(text_latent, d_embedding, p):
    """Pure-JAX f32 reference matching the PyTorch module exactly (training-mode BN)."""
    x = jnp.concatenate([text_latent, d_embedding], axis=1)
    h = x @ p["w1"] + p["b1"]
    mean = jnp.mean(h, axis=0, keepdims=True)
    var = jnp.mean((h - mean) ** 2, axis=0, keepdims=True)
    h = (h - mean) / jnp.sqrt(var + BN_EPS) * p["gamma"] + p["beta"]
    h = jnp.maximum(h, 0.0)
    embed = h @ p["w2"] + p["b2"]
    logits = embed @ p["w3"] + p["b3"]
    return logits, embed


if __name__ == "__main__":
    # Module defaults: block_dim=28, embed_dim=100 (concat dim = 128), batch=8,
    # hidden=256, output_embed_dim=100, k_bins=5.
    B, block_dim, embed_dim = 8, 28, 100
    output_embed_dim, k_bins = 100, 5

    key = jax.random.PRNGKey(0)
    k_tl, k_de, k_params = jax.random.split(key, 3)
    text_latent = jax.random.normal(k_tl, (B, block_dim), jnp.float32)
    d_embedding = jax.random.normal(k_de, (B, embed_dim), jnp.float32)
    params = init_params(k_params, block_dim, embed_dim, output_embed_dim, k_bins)
    prep = prepare_params(params, block_dim)

    out_slab = vae_cluster_forward(text_latent, d_embedding, prep)
    jax.block_until_ready(out_slab)

    # Correctness vs. full-f32 torch-semantics reference; tolerance accounts for
    # bf16 weight/activation quantization with f32 accumulation.  (Note: logits
    # use the pre-fused w2 @ w3, so they won't bitwise equal embed @ w3 + b3
    # recomputed from the quantized embed — fine within tolerance.)
    logits, embed = split_outputs(out_slab, prep)
    ref_logits, ref_embed = _reference_forward(text_latent, d_embedding, params)
    assert out_slab.shape == (B, prep["pad_out"])
    assert logits.shape == (B, k_bins) and embed.shape == (B, output_embed_dim)
    assert jnp.allclose(logits, ref_logits, atol=5e-2, rtol=5e-2)
    assert jnp.allclose(embed, ref_embed, atol=5e-2, rtol=5e-2)

    print("KERNEL_OK")
</pallas_src>

<mosaic_0001>
module attributes {stable_mosaic.version = 11 : i64} {
  func.func @_vae_cluster_kernel(%arg0: memref<8x128xbf16, #tpu.memory_space<vmem>>, %arg1: memref<128x256xbf16, #tpu.memory_space<vmem>>, %arg2: memref<8x256xf32, #tpu.memory_space<vmem>>, %arg3: memref<256x256xbf16, #tpu.memory_space<vmem>>, %arg4: memref<8x256xf32, #tpu.memory_space<vmem>>) attributes {dimension_semantics = [], scalar_prefetch = 0 : i64, scratch_operands = 0 : i64, tpu.core_type = #tpu.core_type<tc>} {
    %c0 = arith.constant 0 : index
    %c0_0 = arith.constant 0 : index
    %0 = vector.load %arg0[%c0, %c0_0] : memref<8x128xbf16, #tpu.memory_space<vmem>>, vector<8x128xbf16>
    %c0_1 = arith.constant 0 : index
    %c0_2 = arith.constant 0 : index
    %1 = vector.load %arg1[%c0_1, %c0_2] : memref<128x256xbf16, #tpu.memory_space<vmem>>, vector<128x256xbf16>
    %cst = arith.constant dense<0.000000e+00> : vector<8x256xf32>
    %2 = tpu.matmul %0, %1, %cst {dimension_numbers = #tpu.dot_dimension_numbers<[1], [0], [0], [1], [0, 0, 1, 1], [], []>} : vector<8x128xbf16>, vector<128x256xbf16>, vector<8x256xf32> -> vector<8x256xf32>
    %cst_3 = arith.constant dense<0.000000e+00> : vector<256xf32>
    %3 = vector.multi_reduction <add>, %2, %cst_3 [0] : vector<8x256xf32> to vector<256xf32>
    %4 = vector.shape_cast %3 : vector<256xf32> to vector<1x256xf32>
    %5 = arith.mulf %2, %2 : vector<8x256xf32>
    %cst_4 = arith.constant dense<0.000000e+00> : vector<256xf32>
    %6 = vector.multi_reduction <add>, %5, %cst_4 [0] : vector<8x256xf32> to vector<256xf32>
    %7 = vector.shape_cast %6 : vector<256xf32> to vector<1x256xf32>
    %cst_5 = arith.constant 1.250000e-01 : f32
    %8 = vector.broadcast %cst_5 : f32 to vector<1x256xf32>
    %9 = arith.mulf %4, %8 : vector<1x256xf32>
    %cst_6 = arith.constant 1.250000e-01 : f32
    %10 = vector.broadcast %cst_6 : f32 to vector<1x256xf32>
    %11 = arith.mulf %7, %10 : vector<1x256xf32>
    %12 = arith.mulf %9, %9 : vector<1x256xf32>
    %13 = arith.subf %11, %12 : vector<1x256xf32>
    %c0_7 = arith.constant 0 : index
    %c0_8 = arith.constant 0 : index
    %14 = vector.load %arg2[%c0_7, %c0_8] : memref<8x256xf32, #tpu.memory_space<vmem>>, vector<1x256xf32>
    %c1 = arith.constant 1 : index
    %c0_9 = arith.constant 0 : index
    %15 = vector.load %arg2[%c1, %c0_9] : memref<8x256xf32, #tpu.memory_space<vmem>>, vector<1x256xf32>
    %16 = vector.broadcast %9 : vector<1x256xf32> to vector<8x256xf32>
    %17 = arith.subf %2, %16 : vector<8x256xf32>
    %cst_10 = arith.constant 9.99999974E-6 : f32
    %18 = vector.broadcast %cst_10 : f32 to vector<1x256xf32>
    %19 = arith.addf %13, %18 : vector<1x256xf32>
    %20 = math.rsqrt %19 : vector<1x256xf32>
    %21 = vector.broadcast %20 : vector<1x256xf32> to vector<8x256xf32>
    %22 = arith.mulf %17, %21 : vector<8x256xf32>
    %23 = vector.broadcast %14 : vector<1x256xf32> to vector<8x256xf32>
    %24 = arith.mulf %22, %23 : vector<8x256xf32>
    %25 = vector.broadcast %15 : vector<1x256xf32> to vector<8x256xf32>
    %26 = arith.addf %24, %25 : vector<8x256xf32>
    %cst_11 = arith.constant 0.000000e+00 : f32
    %27 = vector.broadcast %cst_11 : f32 to vector<8x256xf32>
    %28 = arith.maximumf %26, %27 : vector<8x256xf32>
    %c2 = arith.constant 2 : index
    %c0_12 = arith.constant 0 : index
    %29 = vector.load %arg2[%c2, %c0_12] : memref<8x256xf32, #tpu.memory_space<vmem>>, vector<1x256xf32>
    %30 = arith.truncf %28 : vector<8x256xf32> to vector<8x256xbf16>
    %c0_13 = arith.constant 0 : index
    %c0_14 = arith.constant 0 : index
    %31 = vector.load %arg3[%c0_13, %c0_14] : memref<256x256xbf16, #tpu.memory_space<vmem>>, vector<256x256xbf16>
    %cst_15 = arith.constant dense<0.000000e+00> : vector<8x256xf32>
    %32 = tpu.matmul %30, %31, %cst_15 {dimension_numbers = #tpu.dot_dimension_numbers<[1], [0], [0], [1], [0, 0, 1, 1], [], []>} : vector<8x256xbf16>, vector<256x256xbf16>, vector<8x256xf32> -> vector<8x256xf32>
    %33 = vector.broadcast %29 : vector<1x256xf32> to vector<8x256xf32>
    %34 = arith.addf %32, %33 : vector<8x256xf32>
    %c0_16 = arith.constant 0 : index
    %c0_17 = arith.constant 0 : index
    %35 = vector.load %arg4[%c0_16, %c0_17] : memref<8x256xf32, #tpu.memory_space<vmem>>, vector<8x256xf32>
    tpu.vector_store %arg4[%c0_16, %c0_17], %34 {strides = array<i32>} : memref<8x256xf32, #tpu.memory_space<vmem>>, vector<8x256xf32>,
    return
  }
}

</mosaic_0001>

<llo_original>
// kernel: tpu_custom_call.1
$region0: #{tpu_custom_call.1}
  #allocation0 [shape = 'u32[]', space=smem, size = 0x4, offset = 0x4, fixed_abs, tag = 'smem constant byte address 0x4 - core index']
  #allocation1 [shape = 'u32[144,128]{1,0:T(1,128)}', space=vmem, size = 0x12000, scoped, tag = 'internal scratch']
  %s0 = inlined_call_operand.hbm [shape: bf16[8,128], index: 0, kind: input, shape index: {}]
  %s1 = inlined_call_operand.hbm [shape: bf16[128,256], index: 1, kind: input, shape index: {}]
  %s2 = inlined_call_operand.hbm [shape: f32[8,256], index: 2, kind: input, shape index: {}]
  %s3 = inlined_call_operand.hbm [shape: bf16[256,256], index: 3, kind: input, shape index: {}]
  %s4 = inlined_call_operand.hbm [shape: f32[8,256], index: 4, kind: output, shape index: {}]
  %s5 = sld [smem:[#allocation0]]
  $region42: #{tpu_custom_call.1} parent=0
    _
  %s7 = ssub.s32 1, %s5
  %s8 = scalar_select 0, %s7, %s5
  $region1: #{tpu_custom_call.1} parent=0
    #allocation2 [shape = 'u8[2048]{0}', space=vmem, size = 0x800, scoped, tag = 'input window, operand 0, single buffered']
    #allocation3 [shape = 's32[1]{0}', space=sflag, size = 0x4, scoped, tag = 'scoped memory for tpu_custom_call.1']
    #allocation4 [shape = 's32[1]{0}', space=sflag, size = 0x4, scoped, tag = 'scoped memory for tpu_custom_call.1']
    #allocation5 [shape = 'u8[65536]{0}', space=vmem, size = 0x10000, scoped, tag = 'input window, operand 1, single buffered']
    #allocation6 [shape = 's32[1]{0}', space=sflag, size = 0x4, scoped, tag = 'scoped memory for tpu_custom_call.1']
    #allocation7 [shape = 'u8[8192]{0}', space=vmem, size = 0x2000, scoped, tag = 'input window, operand 2, single buffered']
    #allocation8 [shape = 'u8[131072]{0}', space=vmem, size = 0x20000, scoped, tag = 'input window, operand 3, single buffered']
    #allocation9 [shape = 's32[1]{0}', space=sflag, size = 0x4, scoped, tag = 'scoped memory for tpu_custom_call.1']
    #allocation10 [shape = 'u8[8192]{0}', space=vmem, size = 0x2000, scoped, tag = 'output window, operand 0, single buffered']
    %9 = vsyncpa [#allocation3], 0
    %10 = vsyncpa [#allocation6], 0
    %11 = vsyncpa [#allocation9], 0
    %12 = vsyncpa [#allocation4], 0
    // Predicated region
    $region2: #{tpu_custom_call.1} parent=1 // pred_check
      _
    $region3: #{tpu_custom_call.1} parent=1 // pred_check_branch
      %14 = sbr.rel (0) target = $region5
    $region4: #{tpu_custom_call.1} parent=1 // pred_region
      %s16 = ssub.s32 64, 64
      %17 = vsyncadd [#allocation3], %s16
      %s19 = sshll.u32 [#allocation2], 4
      %s20 = int_to_ptr.vmem [resolvable:$true] %s19
      %22 = dma.hbm_to_vmem [thread:$0]  %s0, 64, %s20, [#allocation3]
    $region5: #{tpu_custom_call.1} parent=1 // pred_fallthru
      _
    // Predicated region
    $region6: #{tpu_custom_call.1} parent=1 // pred_check
      _
    $region7: #{tpu_custom_call.1} parent=1 // pred_check_branch
      %24 = sbr.rel (0) target = $region9
    $region8: #{tpu_custom_call.1} parent=1 // pred_region
      %s26 = ssub.s32 2048, 2048
      %27 = vsyncadd [#allocation6], %s26
      %s28 = sshll.u32 [#allocation5], 4
      %s29 = int_to_ptr.vmem [resolvable:$true] %s28
      %34 = dma.hbm_to_vmem [thread:$0]  %s1, 2048, %s29, [#allocation6], 128, 128, 8
    $region9: #{tpu_custom_call.1} parent=1 // pred_fallthru
      _
    // Predicated region
    $region10: #{tpu_custom_call.1} parent=1 // pred_check
      _
    $region11: #{tpu_custom_call.1} parent=1 // pred_check_branch
      %36 = sbr.rel (0) target = $region13
    $region12: #{tpu_custom_call.1} parent=1 // pred_region
      %s38 = ssub.s32 256, 256
      %39 = vsyncadd [#allocation6], %s38
      %s41 = sshll.u32 [#allocation7], 4
      %s42 = int_to_ptr.vmem [resolvable:$true] %s41
      %44 = dma.hbm_to_vmem [thread:$0]  %s2, 256, %s42, [#allocation6]
    $region13: #{tpu_custom_call.1} parent=1 // pred_fallthru
      _
    // Predicated region
    $region14: #{tpu_custom_call.1} parent=1 // pred_check
      _
    $region15: #{tpu_custom_call.1} parent=1 // pred_check_branch
      %46 = sbr.rel (0) target = $region17
    $region16: #{tpu_custom_call.1} parent=1 // pred_region
      %s48 = ssub.s32 4096, 4096
      %49 = vsyncadd [#allocation9], %s48
      %s50 = sshll.u32 [#allocation8], 4
      %s51 = int_to_ptr.vmem [resolvable:$true] %s50
      %56 = dma.hbm_to_vmem [thread:$0]  %s3, 4096, %s51, [#allocation9], 128, 128, 8
    $region17: #{tpu_custom_call.1} parent=1 // pred_fallthru
      _
    // Predicated region
    $region18: #{tpu_custom_call.1} parent=1 // pred_check
      _
    $region19: #{tpu_custom_call.1} parent=1 // pred_check_branch
      %58 = sbr.rel (0) target = $region21
    $region20: #{tpu_custom_call.1} parent=1 // pred_region
      %59 = dma.done [#allocation3], 64
    $region21: #{tpu_custom_call.1} parent=1 // pred_fallthru
      _
    // Predicated region
    $region22: #{tpu_custom_call.1} parent=1 // pred_check
      _
    $region23: #{tpu_custom_call.1} parent=1 // pred_check_branch
      %61 = sbr.rel (0) target = $region25
    $region24: #{tpu_custom_call.1} parent=1 // pred_region
      %62 = dma.done [#allocation6], 2048
    $region25: #{tpu_custom_call.1} parent=1 // pred_fallthru
      _
    // Predicated region
    $region26: #{tpu_custom_call.1} parent=1 // pred_check
      _
    $region27: #{tpu_custom_call.1} parent=1 // pred_check_branch
      %64 = sbr.rel (0) target = $region29
    $region28: #{tpu_custom_call.1} parent=1 // pred_region
      %65 = dma.done [#allocation6], 256
    $region29: #{tpu_custom_call.1} parent=1 // pred_fallthru
      _
    // Predicated region
    $region30: #{tpu_custom_call.1} parent=1 // pred_check
      _
    $region31: #{tpu_custom_call.1} parent=1 // pred_check_branch
      %67 = sbr.rel (0) target = $region33
    $region32: #{tpu_custom_call.1} parent=1 // pred_region
      %68 = dma.done [#allocation9], 4096
    $region33: #{tpu_custom_call.1} parent=1 // pred_fallthru
      _
    %v70 = vld [vmem:[#allocation2] sm:$0xf]
    %v71 = vld [vmem:[#allocation5] sm:$0xff]
    %v72 = vld [vmem:[#allocation5 + $0x8] sm:$0xff]
    %v73 = vld [vmem:[#allocation5 + $0x10] sm:$0xff]
    %v74 = vld [vmem:[#allocation5 + $0x18] sm:$0xff]
    %v75 = vld [vmem:[#allocation5 + $0x20] sm:$0xff]
    %v76 = vld [vmem:[#allocation5 + $0x28] sm:$0xff]
    %v77 = vld [vmem:[#allocation5 + $0x30] sm:$0xff]
    %v78 = vld [vmem:[#allocation5 + $0x38] sm:$0xff]
    %v79 = vld [vmem:[#allocation5 + $0x40] sm:$0xff]
    %v80 = vld [vmem:[#allocation5 + $0x48] sm:$0xff]
    %v81 = vld [vmem:[#allocation5 + $0x50] sm:$0xff]
    %v82 = vld [vmem:[#allocation5 + $0x58] sm:$0xff]
    %v83 = vld [vmem:[#allocation5 + $0x60] sm:$0xff]
    %v84 = vld [vmem:[#allocation5 + $0x68] sm:$0xff]
    %v85 = vld [vmem:[#allocation5 + $0x70] sm:$0xff]
    %v86 = vld [vmem:[#allocation5 + $0x78] sm:$0xff]
    %v103 = vunpack.c.l.b16 %v71
    %v104 = vunpack.c.h.b16 %v71
    %v105 = vunpack.c.l.b16 %v72
    %v106 = vunpack.c.h.b16 %v72
    %v107 = vunpack.c.l.b16 %v73
    %v108 = vunpack.c.h.b16 %v73
    %v109 = vunpack.c.l.b16 %v74
    %v110 = vunpack.c.h.b16 %v74
    %v111 = vunpack.c.l.b16 %v75
    %v112 = vunpack.c.h.b16 %v75
    %v113 = vunpack.c.l.b16 %v76
    %v114 = vunpack.c.h.b16 %v76
    %v115 = vunpack.c.l.b16 %v77
    %v116 = vunpack.c.h.b16 %v77
    %v117 = vunpack.c.l.b16 %v78
    %v118 = vunpack.c.h.b16 %v78
    %v119 = vunpack.c.l.b16 %v79
    %v120 = vunpack.c.h.b16 %v79
    %v121 = vunpack.c.l.b16 %v80
    %v122 = vunpack.c.h.b16 %v80
    %v123 = vunpack.c.l.b16 %v81
    %v124 = vunpack.c.h.b16 %v81
    %v125 = vunpack.c.l.b16 %v82
    %v126 = vunpack.c.h.b16 %v82
    %v127 = vunpack.c.l.b16 %v83
    %v128 = vunpack.c.h.b16 %v83
    %v129 = vunpack.c.l.b16 %v84
    %v130 = vunpack.c.h.b16 %v84
    %v131 = vunpack.c.l.b16 %v85
    %v132 = vunpack.c.h.b16 %v85
    %v133 = vunpack.c.l.b16 %v86
    %v134 = vunpack.c.h.b16 %v86
    %v135 = vpack.c.b16 %v105, %v103
    %v136 = vpack.c.b16 %v106, %v104
    %v137 = vpack.c.b16 %v109, %v107
    %v138 = vpack.c.b16 %v110, %v108
    %v139 = vpack.c.b16 %v113, %v111
    %v140 = vpack.c.b16 %v114, %v112
    %v141 = vpack.c.b16 %v117, %v115
    %v142 = vpack.c.b16 %v118, %v116
    %v143 = vpack.c.b16 %v121, %v119
    %v144 = vpack.c.b16 %v122, %v120
    %v145 = vpack.c.b16 %v125, %v123
    %v146 = vpack.c.b16 %v126, %v124
    %v147 = vpack.c.b16 %v129, %v127
    %v148 = vpack.c.b16 %v130, %v128
    %v149 = vpack.c.b16 %v133, %v131
    %v150 = vpack.c.b16 %v134, %v132
    %167 = vmatprep.subr.bf16.mxu0 %v136
    %168 = vmatpush1.bf16.msra.mxu0 %v135
    %169 = vmatprep.subr.bf16.mxu0 %v138
    %170 = vmatpush1.bf16.msra.mxu0 %v137
    %171 = vmatprep.subr.bf16.mxu0 %v140
    %172 = vmatpush1.bf16.msra.mxu0 %v139
    %173 = vmatprep.subr.bf16.mxu0 %v142
    %174 = vmatpush1.bf16.msra.mxu0 %v141
    %175 = vmatprep.subr.bf16.mxu0 %v144
    %176 = vmatpush1.bf16.msra.mxu0 %v143
    %177 = vmatprep.subr.bf16.mxu0 %v146
    %178 = vmatpush1.bf16.msra.mxu0 %v145
    %179 = vmatprep.subr.bf16.mxu0 %v148
    %180 = vmatpush1.bf16.msra.mxu0 %v147
    %181 = vmatprep.subr.bf16.mxu0 %v150
    %182 = vmatpush1.bf16.msra.mxu0 %v149
    %183 = vmatprep.subr.bf16.mxu0 0
    %184 = vmatpush1.bf16.msra.mxu0 0
    %185 = vmatprep.subr.bf16.mxu0 0
    %186 = vmatpush1.bf16.msra.mxu0 0
    %187 = vmatprep.subr.bf16.mxu0 0
    %188 = vmatpush1.bf16.msra.mxu0 0
    %189 = vmatprep.subr.bf16.mxu0 0
    %190 = vmatpush1.bf16.msra.mxu0 0
    %191 = vmatprep.subr.bf16.mxu0 0
    %192 = vmatpush1.bf16.msra.mxu0 0
    %193 = vmatprep.subr.bf16.mxu0 0
    %194 = vmatpush1.bf16.msra.mxu0 0
    %195 = vmatprep.subr.bf16.mxu0 0
    %196 = vmatpush1.bf16.msra.mxu0 0
    %197 = vmatprep.subr.bf16.mxu0 0
    %198 = vmatpush1.bf16.msra.mxu0 0
    %199 = vmatprep.mubr.bf16.mxu0 0
    %200 = vmatmul.mubr.bf16.gmra.mrb[0].mxu0 %v70
    %v201 = vpop.f32.mrb[0].mxu0
    %v202 = vadd.f32 0.0, %v201
    %v203 = vpop.f32.mrb[0].mxu0
    %v204 = vadd.f32 0.0, %v203
    %v205 = vpop.f32.mrb[0].mxu0
    %v206 = vpop.f32.mrb[0].mxu0
    %207 = vdwg.mxu0
    %v208 = vrot.slane %v202, 4
    %v209 = vadd.f32 %v202, %v208
    %v210 = vrot.slane %v209, 2
    %v211 = vadd.f32 %v209, %v210
    %v212 = vrot.slane %v211, 1
    %v213 = vadd.f32 %v211, %v212
    %v214 = vrot.slane %v204, 4
    %v215 = vadd.f32 %v204, %v214
    %v216 = vrot.slane %v215, 2
    %v217 = vadd.f32 %v215, %v216
    %v218 = vrot.slane %v217, 1
    %v219 = vadd.f32 %v217, %v218
    %v220 = vmul.f32 %v202, %v202
    %v221 = vmul.f32 %v204, %v204
    %v222 = vrot.slane %v220, 4
    %v223 = vadd.f32 %v220, %v222
    %v224 = vrot.slane %v223, 2
    %v225 = vadd.f32 %v223, %v224
    %v226 = vrot.slane %v225, 1
    %v227 = vadd.f32 %v225, %v226
    %v228 = vrot.slane %v221, 4
    %v229 = vadd.f32 %v221, %v228
    %v230 = vrot.slane %v229, 2
    %v231 = vadd.f32 %v229, %v230
    %v232 = vrot.slane %v231, 1
    %v233 = vadd.f32 %v231, %v232
    %v234 = vmul.f32 %v213, 0.125
    %v235 = vmul.f32 %v219, 0.125
    %v236 = vmul.f32 %v227, 0.125
    %v237 = vmul.f32 %v233, 0.125
    %v238 = vmul.f32 %v234, %v234
    %v239 = vmul.f32 %v235, %v235
    %v240 = vsub.f32 %v236, %v238
    %v241 = vsub.f32 %v237, %v239
    %v242 = vld [vmem:[#allocation7] ss:$8 sm:$0x3]
    %s243 = scalar_lea.vmem [#allocation7], 1
    %v244 = vld [vmem:[%s243] ss:$8 sm:$0x3]
    %v245 = vsub.f32 %v202, %v234
    %v246 = vsub.f32 %v204, %v235
    %v247 = vadd.f32 %v240, 1e-05
    %v248 = vadd.f32 %v241, 1e-05
    %v249 = vrsqrt.pop %v247
    %v250 = vrsqrt.pop %v248
    %v251 = vmul.f32 %v245, %v249
    %v252 = vmul.f32 %v246, %v250
    %v254 = vlaneseq
    %v255 = vshrl.u32 %v254, 7
    %v256 = vsub.s32 0, %v255
    %v257 = vrot.slane %v242, %v256
    %v258 = vlaneseq
    %v259 = vshrl.u32 %v258, 7
    %v260 = vsub.s32 1, %v259
    %v261 = vrot.slane %v242, %v260
    %v264 = vmul.f32 %v251, %v257
    %v265 = vmul.f32 %v252, %v261
    %v267 = vlaneseq
    %v268 = vshrl.u32 %v267, 7
    %v269 = vsub.s32 0, %v268
    %v270 = vrot.slane %v244, %v269
    %v271 = vlaneseq
    %v272 = vshrl.u32 %v271, 7
    %v273 = vsub.s32 1, %v272
    %v274 = vrot.slane %v244, %v273
    %v277 = vadd.f32 %v264, %v270
    %v278 = vadd.f32 %v265, %v274
    %v279 = vmax.f32 %v277, 0.0
    %v280 = vmax.f32 %v278, 0.0
    %s281 = scalar_lea.vmem [#allocation7], 2
    %v282 = vld [vmem:[%s281] ss:$8 sm:$0x3]
    %v283 = vpack.c.bf16 %v279, %v279
    %v284 = vpack.c.bf16 %v280, %v280
    %v285 = vld [vmem:[#allocation8] sm:$0xff]
    %v286 = vld [vmem:[#allocation8 + $0x8] sm:$0xff]
    %v287 = vld [vmem:[#allocation8 + $0x10] sm:$0xff]
    %v288 = vld [vmem:[#allocation8 + $0x18] sm:$0xff]
    %v289 = vld [vmem:[#allocation8 + $0x20] sm:$0xff]
    %v290 = vld [vmem:[#allocation8 + $0x28] sm:$0xff]
    %v291 = vld [vmem:[#allocation8 + $0x30] sm:$0xff]
    %v292 = vld [vmem:[#allocation8 + $0x38] sm:$0xff]
    %v293 = vld [vmem:[#allocation8 + $0x40] sm:$0xff]
    %v294 = vld [vmem:[#allocation8 + $0x48] sm:$0xff]
    %v295 = vld [vmem:[#allocation8 + $0x50] sm:$0xff]
    %v296 = vld [vmem:[#allocation8 + $0x58] sm:$0xff]
    %v297 = vld [vmem:[#allocation8 + $0x60] sm:$0xff]
    %v298 = vld [vmem:[#allocation8 + $0x68] sm:$0xff]
    %v299 = vld [vmem:[#allocation8 + $0x70] sm:$0xff]
    %v300 = vld [vmem:[#allocation8 + $0x78] sm:$0xff]
    %v301 = vld [vmem:[#allocation8 + $0x80] sm:$0xff]
    %v302 = vld [vmem:[#allocation8 + $0x88] sm:$0xff]
    %v303 = vld [vmem:[#allocation8 + $0x90] sm:$0xff]
    %v304 = vld [vmem:[#allocation8 + $0x98] sm:$0xff]
    %v305 = vld [vmem:[#allocation8 + $0xa0] sm:$0xff]
    %v306 = vld [vmem:[#allocation8 + $0xa8] sm:$0xff]
    %v307 = vld [vmem:[#allocation8 + $0xb0] sm:$0xff]
    %v308 = vld [vmem:[#allocation8 + $0xb8] sm:$0xff]
    %v309 = vld [vmem:[#allocation8 + $0xc0] sm:$0xff]
    %v310 = vld [vmem:[#allocation8 + $0xc8] sm:$0xff]
    %v311 = vld [vmem:[#allocation8 + $0xd0] sm:$0xff]
    %v312 = vld [vmem:[#allocation8 + $0xd8] sm:$0xff]
    %v313 = vld [vmem:[#allocation8 + $0xe0] sm:$0xff]
    %v314 = vld [vmem:[#allocation8 + $0xe8] sm:$0xff]
    %v315 = vld [vmem:[#allocation8 + $0xf0] sm:$0xff]
    %v316 = vld [vmem:[#allocation8 + $0xf8] sm:$0xff]
    %v318 = vlaneseq
    %v319 = vshrl.u32 %v318, 7
    %v320 = vsub.s32 0, %v319
    %v321 = vrot.slane %v282, %v320
    %v322 = vlaneseq
    %v323 = vshrl.u32 %v322, 7
    %v324 = vsub.s32 1, %v323
    %v325 = vrot.slane %v282, %v324
    %v360 = vunpack.c.l.b16 %v285
    %v361 = vunpack.c.h.b16 %v285
    %v362 = vunpack.c.l.b16 %v286
    %v363 = vunpack.c.h.b16 %v286
    %v364 = vunpack.c.l.b16 %v287
    %v365 = vunpack.c.h.b16 %v287
    %v366 = vunpack.c.l.b16 %v288
    %v367 = vunpack.c.h.b16 %v288
    %v368 = vunpack.c.l.b16 %v289
    %v369 = vunpack.c.h.b16 %v289
    %v370 = vunpack.c.l.b16 %v290
    %v371 = vunpack.c.h.b16 %v290
    %v372 = vunpack.c.l.b16 %v291
    %v373 = vunpack.c.h.b16 %v291
    %v374 = vunpack.c.l.b16 %v292
    %v375 = vunpack.c.h.b16 %v292
    %v376 = vunpack.c.l.b16 %v293
    %v377 = vunpack.c.h.b16 %v293
    %v378 = vunpack.c.l.b16 %v294
    %v379 = vunpack.c.h.b16 %v294
    %v380 = vunpack.c.l.b16 %v295
    %v381 = vunpack.c.h.b16 %v295
    %v382 = vunpack.c.l.b16 %v296
    %v383 = vunpack.c.h.b16 %v296
    %v384 = vunpack.c.l.b16 %v297
    %v385 = vunpack.c.h.b16 %v297
    %v386 = vunpack.c.l.b16 %v298
    %v387 = vunpack.c.h.b16 %v298
    %v388 = vunpack.c.l.b16 %v299
    %v389 = vunpack.c.h.b16 %v299
    %v390 = vunpack.c.l.b16 %v300
    %v391 = vunpack.c.h.b16 %v300
    %v392 = vunpack.c.l.b16 %v301
    %v393 = vunpack.c.h.b16 %v301
    %v394 = vunpack.c.l.b16 %v302
    %v395 = vunpack.c.h.b16 %v302
    %v396 = vunpack.c.l.b16 %v303
    %v397 = vunpack.c.h.b16 %v303
    %v398 = vunpack.c.l.b16 %v304
    %v399 = vunpack.c.h.b16 %v304
    %v400 = vunpack.c.l.b16 %v305
    %v401 = vunpack.c.h.b16 %v305
    %v402 = vunpack.c.l.b16 %v306
    %v403 = vunpack.c.h.b16 %v306
    %v404 = vunpack.c.l.b16 %v307
    %v405 = vunpack.c.h.b16 %v307
    %v406 = vunpack.c.l.b16 %v308
    %v407 = vunpack.c.h.b16 %v308
    %v408 = vunpack.c.l.b16 %v309
    %v409 = vunpack.c.h.b16 %v309
    %v410 = vunpack.c.l.b16 %v310
    %v411 = vunpack.c.h.b16 %v310
    %v412 = vunpack.c.l.b16 %v311
    %v413 = vunpack.c.h.b16 %v311
    %v414 = vunpack.c.l.b16 %v312
    %v415 = vunpack.c.h.b16 %v312
    %v416 = vunpack.c.l.b16 %v313
    %v417 = vunpack.c.h.b16 %v313
    %v418 = vunpack.c.l.b16 %v314
    %v419 = vunpack.c.h.b16 %v314
    %v420 = vunpack.c.l.b16 %v315
    %v421 = vunpack.c.h.b16 %v315
    %v422 = vunpack.c.l.b16 %v316
    %v423 = vunpack.c.h.b16 %v316
    %v424 = vpack.c.b16 %v362, %v360
    %v425 = vpack.c.b16 %v363, %v361
    %v426 = vpack.c.b16 %v366, %v364
    %v427 = vpack.c.b16 %v367, %v365
    %v428 = vpack.c.b16 %v370, %v368
    %v429 = vpack.c.b16 %v371, %v369
    %v430 = vpack.c.b16 %v374, %v372
    %v431 = vpack.c.b16 %v375, %v373
    %v432 = vpack.c.b16 %v378, %v376
    %v433 = vpack.c.b16 %v379, %v377
    %v434 = vpack.c.b16 %v382, %v380
    %v435 = vpack.c.b16 %v383, %v381
    %v436 = vpack.c.b16 %v386, %v384
    %v437 = vpack.c.b16 %v387, %v385
    %v438 = vpack.c.b16 %v390, %v388
    %v439 = vpack.c.b16 %v391, %v389
    %v440 = vpack.c.b16 %v394, %v392
    %v441 = vpack.c.b16 %v395, %v393
    %v442 = vpack.c.b16 %v398, %v396
    %v443 = vpack.c.b16 %v399, %v397
    %v444 = vpack.c.b16 %v402, %v400
    %v445 = vpack.c.b16 %v403, %v401
    %v446 = vpack.c.b16 %v406, %v404
    %v447 = vpack.c.b16 %v407, %v405
    %v448 = vpack.c.b16 %v410, %v408
    %v449 = vpack.c.b16 %v411, %v409
    %v450 = vpack.c.b16 %v414, %v412
    %v451 = vpack.c.b16 %v415, %v413
    %v452 = vpack.c.b16 %v418, %v416
    %v453 = vpack.c.b16 %v419, %v417
    %v454 = vpack.c.b16 %v422, %v420
    %v455 = vpack.c.b16 %v423, %v421
    %488 = vmatprep.subr.bf16.mxu0 %v425
    %489 = vmatpush1.bf16.msra.mxu0 %v424
    %490 = vmatprep.subr.bf16.mxu0 %v427
    %491 = vmatpush1.bf16.msra.mxu0 %v426
    %492 = vmatprep.subr.bf16.mxu0 %v429
    %493 = vmatpush1.bf16.msra.mxu0 %v428
    %494 = vmatprep.subr.bf16.mxu0 %v431
    %495 = vmatpush1.bf16.msra.mxu0 %v430
    %496 = vmatprep.subr.bf16.mxu0 %v433
    %497 = vmatpush1.bf16.msra.mxu0 %v432
    %498 = vmatprep.subr.bf16.mxu0 %v435
    %499 = vmatpush1.bf16.msra.mxu0 %v434
    %500 = vmatprep.subr.bf16.mxu0 %v437
    %501 = vmatpush1.bf16.msra.mxu0 %v436
    %502 = vmatprep.subr.bf16.mxu0 %v439
    %503 = vmatpush1.bf16.msra.mxu0 %v438
    %504 = vmatprep.subr.bf16.mxu0 %v441
    %505 = vmatpush1.bf16.msra.mxu0 %v440
    %506 = vmatprep.subr.bf16.mxu0 %v443
    %507 = vmatpush1.bf16.msra.mxu0 %v442
    %508 = vmatprep.subr.bf16.mxu0 %v445
    %509 = vmatpush1.bf16.msra.mxu0 %v444
    %510 = vmatprep.subr.bf16.mxu0 %v447
    %511 = vmatpush1.bf16.msra.mxu0 %v446
    %512 = vmatprep.subr.bf16.mxu0 %v449
    %513 = vmatpush1.bf16.msra.mxu0 %v448
    %514 = vmatprep.subr.bf16.mxu0 %v451
    %515 = vmatpush1.bf16.msra.mxu0 %v450
    %516 = vmatprep.subr.bf16.mxu0 %v453
    %517 = vmatpush1.bf16.msra.mxu0 %v452
    %518 = vmatprep.subr.bf16.mxu0 %v455
    %519 = vmatpush1.bf16.msra.mxu0 %v454
    %520 = vmatprep.mubr.bf16.mxu0 %v284
    %521 = vmatmul.mubr.bf16.gmra.mrb[0].mxu0 %v283
    %v522 = vpop.f32.mrb[0].mxu0
    %v523 = vadd.f32 %v321, %v522
    %v524 = vpop.f32.mrb[0].mxu0
    %v525 = vadd.f32 %v325, %v524
    %v526 = vpop.f32.mrb[0].mxu0
    %v527 = vpop.f32.mrb[0].mxu0
    %528 = vdwg.mxu0
    %529 = vst [vmem:[#allocation10] sm:$0xff] %v523
    %530 = vst [vmem:[#allocation10 + $0x8] sm:$0xff] %v525
    // Predicated region
    $region34: #{tpu_custom_call.1} parent=1 // pred_check
      _
    $region35: #{tpu_custom_call.1} parent=1 // pred_check_branch
      %532 = sbr.rel (0) target = $region37
    $region36: #{tpu_custom_call.1} parent=1 // pred_region
      %s534 = ssub.s32 256, 256
      %535 = vsyncadd [#allocation4], %s534
      %s537 = sshll.u32 [#allocation10], 4
      %s538 = int_to_ptr.vmem [resolvable:$true] %s537
      %540 = dma.vmem_to_hbm [thread:$0]  %s538, 256, %s4, [#allocation4]
    $region37: #{tpu_custom_call.1} parent=1 // pred_fallthru
      _
    // Predicated region
    $region38: #{tpu_custom_call.1} parent=1 // pred_check
      _
    $region39: #{tpu_custom_call.1} parent=1 // pred_check_branch
      %542 = sbr.rel (0) target = $region41
    $region40: #{tpu_custom_call.1} parent=1 // pred_region
      %543 = dma.done [#allocation4], 256
    $region41: #{tpu_custom_call.1} parent=1 // pred_fallthru
      _
    %544 = vsyncpa [#allocation3], 1
    %545 = vsyncpa [#allocation6], 1
    %546 = vsyncpa [#allocation9], 1
    %547 = vsyncpa [#allocation4], 1

</llo_original>
